<compile_context>
chip_gen: v6e
topology: v6e:2x2x1
jax: 0.10.0
libtpu: 0.0.40
codegen_flags: <defaults>
</compile_context>

<pallas_src>
import jax
import jax.numpy as jnp
from jax.experimental import pallas as pl
from jax.experimental.pallas import tpu as pltpu


def ffn_kernel(x_ref, w1_ref, b1_ref, w2_ref, b2_ref, o_ref):
    """fc1 -> ReLU -> fc2 on the current batch tile, entirely in VMEM."""
    h = jnp.dot(x_ref[...], w1_ref[...], preferred_element_type=jnp.float32)
    h = jnp.maximum(h + b1_ref[...], 0.0)                      # Linear + ReLU (f32)
    y = jnp.dot(h.astype(w2_ref.dtype), w2_ref[...],
                preferred_element_type=jnp.float32)            # final Linear
    o_ref[...] = (y + b2_ref[...]).astype(o_ref.dtype)


def custom_ffn_v1(x, w1, b1, w2, b2, *, block_batch=4096, use_bf16=False):
    """x: (batch, in).  w1: (in, hid), b1: (1, hid), w2: (hid, out), b2: (1, out).

    use_bf16=True stores x/W1/W2 in bf16 (halves HBM traffic on the arrays
    that matter) while keeping f32 accumulation; it loosens exact f32 parity.
    """
    batch, in_dim = x.shape
    hid = w1.shape[1]
    out_dim = w2.shape[1]

    if use_bf16:
        x = x.astype(jnp.bfloat16)
        w1 = w1.astype(jnp.bfloat16)
        w2 = w2.astype(jnp.bfloat16)
    b1 = b1.astype(jnp.float32)
    b2 = b2.astype(jnp.float32)

    x_b = x.dtype.itemsize
    w_b = w1.dtype.itemsize

    def _step_vmem_bytes(t):
        # Rough per-grid-step working set (double-buffered x / out tiles,
        # f32 intermediates, resident weights + biases).
        return (2 * t * in_dim * x_b
                + 2 * t * out_dim * 4
                + 3 * t * hid * 4
                + (in_dim * hid + hid * out_dim) * w_b
                + (hid + out_dim) * 4)

    # Batch tile: sublane-packed (8 for f32, 16 for bf16).  Aim for >= 2 grid
    # steps so both v7x TensorCores get work; cap the working set at ~40 MiB
    # so the tile also fits v7x's 64 MiB physical VMEM.
    sublane = 16 if use_bf16 else 8
    if batch <= 2 * sublane:
        tb = batch                                    # single full-extent block
    else:
        target = min(block_batch, max(batch // 2, sublane))
        tb = max(sublane, (target // sublane) * sublane)
        while tb > sublane and _step_vmem_bytes(tb) > 40 * 1024 * 1024:
            tb = max(sublane, ((tb // 2) // sublane) * sublane)
    n_blocks = pl.cdiv(batch, tb)                     # ragged last block OK

    flops = 2 * batch * (in_dim * hid + hid * out_dim)
    bytes_accessed = (batch * in_dim * x_b                      # x
                      + (in_dim * hid + hid * out_dim) * w_b    # W1, W2
                      + (hid + out_dim) * 4                     # b1, b2
                      + batch * out_dim * 4)                    # out (f32)

    return pl.pallas_call(
        ffn_kernel,
        out_shape=jax.ShapeDtypeStruct((batch, out_dim), jnp.float32),
        grid=(n_blocks,),
        in_specs=[
            pl.BlockSpec((tb, in_dim), lambda i: (i, 0)),      # x: batch-tiled
            pl.BlockSpec((in_dim, hid), lambda i: (0, 0)),     # W1: VMEM-resident
            pl.BlockSpec((1, hid), lambda i: (0, 0)),          # b1: VMEM-resident
            pl.BlockSpec((hid, out_dim), lambda i: (0, 0)),    # W2: VMEM-resident
            pl.BlockSpec((1, out_dim), lambda i: (0, 0)),      # b2: VMEM-resident
        ],
        out_specs=pl.BlockSpec((tb, out_dim), lambda i: (i, 0)),  # true-shaped out
        compiler_params=pltpu.CompilerParams(
            dimension_semantics=("parallel",),     # megacore split on v7x
            vmem_limit_bytes=48 * 1024 * 1024,     # cap; safe on v5e/v6e/v7x
        ),
        cost_estimate=pl.CostEstimate(
            flops=flops, transcendentals=0, bytes_accessed=bytes_accessed
        ),
    )(x, w1, b1, w2, b2)


def reference_ffn(x, w1, b1, w2, b2):
    """Pure-JAX reference (matches PyTorch fc1 -> ReLU -> fc2 in f32)."""
    return jnp.maximum(x @ w1 + b1, 0.0) @ w2 + b2


if __name__ == "__main__":
    # Shapes consistent with the module; batch=200 (not a multiple of the
    # tile) plus block_batch=64 exercises the batch grid with a ragged final
    # block and the narrow (out_dim=8) unpadded output store path.
    input_dim, hidden_dim, output_dim = 32, 64, 8
    batch = 200

    key = jax.random.PRNGKey(0)
    kx, k1w, k1b, k2w, k2b = jax.random.split(key, 5)
    x = jax.random.normal(kx, (batch, input_dim), jnp.float32)

    bound1 = 1.0 / float(input_dim) ** 0.5
    w1 = jax.random.uniform(k1w, (input_dim, hidden_dim), jnp.float32, -bound1, bound1)
    b1 = jax.random.uniform(k1b, (1, hidden_dim), jnp.float32, -bound1, bound1)
    bound2 = 1.0 / float(hidden_dim) ** 0.5
    w2 = jax.random.uniform(k2w, (hidden_dim, output_dim), jnp.float32, -bound2, bound2)
    b2 = jax.random.uniform(k2b, (1, output_dim), jnp.float32, -bound2, bound2)

    ref = reference_ffn(x, w1, b1, w2, b2)

    # f32 path: exact parity with the PyTorch reference.
    out = custom_ffn_v1(x, w1, b1, w2, b2, block_batch=64)
    out = jax.block_until_ready(out)
    assert out.shape == (batch, output_dim)
    assert jnp.allclose(out, ref, atol=1e-4, rtol=1e-4), "f32 mismatch vs reference"

    # bf16 HBM-operand path (f32 accumulation): halves x/W traffic, looser tol.
    out_bf16 = custom_ffn_v1(x, w1, b1, w2, b2, block_batch=64, use_bf16=True)
    out_bf16 = jax.block_until_ready(out_bf16)
    assert out_bf16.shape == (batch, output_dim)
    assert jnp.allclose(out_bf16, ref, atol=5e-2, rtol=5e-2), "bf16 mismatch vs reference"

    print("KERNEL_OK")
</pallas_src>

<mosaic_0001>
module attributes {stable_mosaic.version = 11 : i64} {
  func.func @ffn_kernel(%arg0: i32, %arg1: memref<64x32xf32, #tpu.memory_space<vmem>>, %arg2: memref<32x64xf32, #tpu.memory_space<vmem>>, %arg3: memref<1x64xf32, #tpu.memory_space<vmem>>, %arg4: memref<64x8xf32, #tpu.memory_space<vmem>>, %arg5: memref<1x8xf32, #tpu.memory_space<vmem>>, %arg6: memref<64x8xf32, #tpu.memory_space<vmem>>) attributes {dimension_semantics = [#tpu.dimension_semantics<parallel>], iteration_bounds = array<i64: 4>, scalar_prefetch = 0 : i64, scratch_operands = 0 : i64, tpu.core_type = #tpu.core_type<tc>, window_params = [{transform_indices = @transform_0, window_bounds = array<i64: 64, 32>}, {pipeline_mode = #tpu.pipeline_mode<synchronous>, transform_indices = @transform_1, window_bounds = array<i64: 32, 64>}, {pipeline_mode = #tpu.pipeline_mode<synchronous>, transform_indices = @transform_2, window_bounds = array<i64: 1, 64>}, {pipeline_mode = #tpu.pipeline_mode<synchronous>, transform_indices = @transform_3, window_bounds = array<i64: 64, 8>}, {pipeline_mode = #tpu.pipeline_mode<synchronous>, transform_indices = @transform_4, window_bounds = array<i64: 1, 8>}, {transform_indices = @transform_5, window_bounds = array<i64: 64, 8>}]} {
    %c0 = arith.constant 0 : index
    %c0_0 = arith.constant 0 : index
    %0 = vector.load %arg1[%c0, %c0_0] : memref<64x32xf32, #tpu.memory_space<vmem>>, vector<64x32xf32>
    %c0_1 = arith.constant 0 : index
    %c0_2 = arith.constant 0 : index
    %1 = vector.load %arg2[%c0_1, %c0_2] : memref<32x64xf32, #tpu.memory_space<vmem>>, vector<32x64xf32>
    %cst = arith.constant dense<0.000000e+00> : vector<64x64xf32>
    %2 = tpu.matmul %0, %1, %cst {dimension_numbers = #tpu.dot_dimension_numbers<[1], [0], [0], [1], [0, 0, 1, 1], [], []>} : vector<64x32xf32>, vector<32x64xf32>, vector<64x64xf32> -> vector<64x64xf32>
    %c0_3 = arith.constant 0 : index
    %c0_4 = arith.constant 0 : index
    %3 = vector.load %arg3[%c0_3, %c0_4] : memref<1x64xf32, #tpu.memory_space<vmem>>, vector<1x64xf32>
    %4 = vector.broadcast %3 : vector<1x64xf32> to vector<64x64xf32>
    %5 = arith.addf %2, %4 : vector<64x64xf32>
    %cst_5 = arith.constant 0.000000e+00 : f32
    %6 = vector.broadcast %cst_5 : f32 to vector<64x64xf32>
    %7 = arith.maximumf %5, %6 : vector<64x64xf32>
    %c0_6 = arith.constant 0 : index
    %c0_7 = arith.constant 0 : index
    %8 = vector.load %arg4[%c0_6, %c0_7] : memref<64x8xf32, #tpu.memory_space<vmem>>, vector<64x8xf32>
    %cst_8 = arith.constant dense<0.000000e+00> : vector<64x8xf32>
    %9 = tpu.matmul %7, %8, %cst_8 {dimension_numbers = #tpu.dot_dimension_numbers<[1], [0], [0], [1], [0, 0, 1, 1], [], []>} : vector<64x64xf32>, vector<64x8xf32>, vector<64x8xf32> -> vector<64x8xf32>
    %c0_9 = arith.constant 0 : index
    %c0_10 = arith.constant 0 : index
    %10 = vector.load %arg5[%c0_9, %c0_10] : memref<1x8xf32, #tpu.memory_space<vmem>>, vector<1x8xf32>
    %11 = vector.broadcast %10 : vector<1x8xf32> to vector<64x8xf32>
    %12 = arith.addf %9, %11 : vector<64x8xf32>
    %c0_11 = arith.constant 0 : index
    %c0_12 = arith.constant 0 : index
    %13 = vector.load %arg6[%c0_11, %c0_12] : memref<64x8xf32, #tpu.memory_space<vmem>>, vector<64x8xf32>
    tpu.vector_store %arg6[%c0_11, %c0_12], %12 {strides = array<i32>} : memref<64x8xf32, #tpu.memory_space<vmem>>, vector<64x8xf32>,
    return
  }
  func.func @transform_0(%arg0: i32) -> (i32, i32) {
    %c0_i32 = arith.constant 0 : i32
    %c0_i32_0 = arith.constant 0 : i32
    return %arg0, %c0_i32 : i32, i32
  }
  func.func @transform_1(%arg0: i32) -> (i32, i32) {
    %c0_i32 = arith.constant 0 : i32
    %c0_i32_0 = arith.constant 0 : i32
    %c0_i32_1 = arith.constant 0 : i32
    return %c0_i32, %c0_i32_0 : i32, i32
  }
  func.func @transform_2(%arg0: i32) -> (i32, i32) {
    %c0_i32 = arith.constant 0 : i32
    %c0_i32_0 = arith.constant 0 : i32
    %c0_i32_1 = arith.constant 0 : i32
    return %c0_i32, %c0_i32_0 : i32, i32
  }
  func.func @transform_3(%arg0: i32) -> (i32, i32) {
    %c0_i32 = arith.constant 0 : i32
    %c0_i32_0 = arith.constant 0 : i32
    %c0_i32_1 = arith.constant 0 : i32
    return %c0_i32, %c0_i32_0 : i32, i32
  }
  func.func @transform_4(%arg0: i32) -> (i32, i32) {
    %c0_i32 = arith.constant 0 : i32
    %c0_i32_0 = arith.constant 0 : i32
    %c0_i32_1 = arith.constant 0 : i32
    return %c0_i32, %c0_i32_0 : i32, i32
  }
  func.func @transform_5(%arg0: i32) -> (i32, i32) {
    %c0_i32 = arith.constant 0 : i32
    %c0_i32_0 = arith.constant 0 : i32
    return %arg0, %c0_i32 : i32, i32
  }
}

</mosaic_0001>

<llo_original>
// kernel: tpu_custom_call.1
$region0: #{tpu_custom_call.1}
  #allocation0 [shape = 'u32[]', space=smem, size = 0x4, offset = 0x4, fixed_abs, tag = 'smem constant byte address 0x4 - core index']
  #allocation1 [shape = 'u32[144,128]{1,0:T(1,128)}', space=vmem, size = 0x12000, scoped, tag = 'internal scratch']
  %s0 = inlined_call_operand.vmem [shape: f32[200,32], index: 0, kind: input, shape index: {}]
  %s1 = inlined_call_operand.vmem [shape: f32[32,64], index: 1, kind: input, shape index: {}]
  %s2 = inlined_call_operand.vmem [shape: f32[1,64], index: 2, kind: input, shape index: {}]
  %s3 = inlined_call_operand.vmem [shape: f32[64,8], index: 3, kind: input, shape index: {}]
  %s4 = inlined_call_operand.vmem [shape: f32[1,8], index: 4, kind: input, shape index: {}]
  %s5 = inlined_call_operand.vmem [shape: f32[200,8], index: 5, kind: output, shape index: {}]
  %s6 = sld [smem:[#allocation0]]
  $region101: #{tpu_custom_call.1} parent=0
    _
  %s8 = ssub.s32 1, %s6
  %s9 = scalar_select 0, %s8, %s6
  $region1: #{tpu_custom_call.1} parent=0
    #allocation2 [shape = 'u8[65536]{0}', space=vmem, size = 0x10000, scoped, tag = 'output window, operand 0']
    loop: start=0, step=1, limit=6
    $region2: #{tpu_custom_call.1} parent=1 // loop_pre_header
      _
    $region3: #{tpu_custom_call.1} parent=1 // loop_header
      %s11 = sphi 0, %s15
      %p12 = scmp.ge.s32.totalorder %s11, 6
      %s21 = sphi 0, %s23
      %s24 = sphi 0, %s21
      %s25 = sphi 0, %s24
      %s41 = sphi 0, %s25
      %s45 = sphi 0, %s45
      %s47 = sphi 0, %s45
      %s48 = sphi 0, %s47
      %s62 = sphi 0, %s48
      %s66 = sphi 0, %s66
      %s68 = sphi 0, %s66
      %s69 = sphi 0, %s68
      %s83 = sphi 0, %s69
      %s87 = sphi 0, %s87
      %s89 = sphi 0, %s87
      %s90 = sphi 0, %s89
      %s104 = sphi 0, %s90
      %s108 = sphi 0, %s108
      %s110 = sphi 0, %s108
      %s111 = sphi 0, %s110
      %s125 = sphi 0, %s111
      %s131 = sphi 0, %s133
      %s134 = sphi 0, %s131
      %s135 = sphi 0, %s134
      %s151 = sphi 0, %s135
    $region4: #{tpu_custom_call.1} parent=1 // loop_header_branch
      %14 = sbr.rel (%p12) target = $region8
    $region5: #{tpu_custom_call.1} parent=1 // loop_body
      %s16 = ssub.s32 %s11, 1
      %s17 = ssub.s32 %s11, 2
      %s18 = sadd.s32 %s11, 1
      %s19 = ssub.s32 %s11, %s18
      %p20 = scmp.eq.s32.totalorder %s19, 0
      %s22 = sadd.s32 %s21, 1
      %s23 = scalar_select %p20, %s21, %s22
      %p26 = pneg %p20
      %p27 = scmp.eq.s32.totalorder %s11, 3
      %p28 = por %p26, %p27
      %p29 = scmp.ne.s32.totalorder %s21, %s24
      %p30 = scmp.eq.s32.totalorder %s11, 0
      %p31 = por %p29, %p30
      %p32 = scmp.ne.s32.totalorder %s21, %s24
      %p33 = scmp.eq.s32.totalorder %s16, 3
      %p34 = por %p32, %p33
      %p35 = scmp.ne.s32.totalorder %s24, %s25
      %p36 = scmp.eq.s32.totalorder %s16, 0
      %p37 = por %p35, %p36
      %p38 = scmp.ne.s32.totalorder %s24, %s25
      %p39 = scmp.eq.s32.totalorder %s17, 3
      %p40 = por %p38, %p39
      %p42 = scmp.ne.s32.totalorder %s25, %s41
      %p43 = scmp.eq.s32.totalorder %s17, 0
      %p44 = por %p42, %p43
      %s46 = sadd.s32 %s45, 1
      %p49 = scmp.eq.s32.totalorder %s11, 3
      %p50 = scmp.ne.s32.totalorder %s45, %s47
      %p51 = scmp.eq.s32.totalorder %s11, 0
      %p52 = por %p50, %p51
      %p53 = scmp.ne.s32.totalorder %s45, %s47
      %p54 = scmp.eq.s32.totalorder %s16, 3
      %p55 = por %p53, %p54
      %p56 = scmp.ne.s32.totalorder %s47, %s48
      %p57 = scmp.eq.s32.totalorder %s16, 0
      %p58 = por %p56, %p57
      %p59 = scmp.ne.s32.totalorder %s47, %s48
      %p60 = scmp.eq.s32.totalorder %s17, 3
      %p61 = por %p59, %p60
      %p63 = scmp.ne.s32.totalorder %s48, %s62
      %p64 = scmp.eq.s32.totalorder %s17, 0
      %p65 = por %p63, %p64
      %s67 = sadd.s32 %s66, 1
      %p70 = scmp.eq.s32.totalorder %s11, 3
      %p71 = scmp.ne.s32.totalorder %s66, %s68
      %p72 = scmp.eq.s32.totalorder %s11, 0
      %p73 = por %p71, %p72
      %p74 = scmp.ne.s32.totalorder %s66, %s68
      %p75 = scmp.eq.s32.totalorder %s16, 3
      %p76 = por %p74, %p75
      %p77 = scmp.ne.s32.totalorder %s68, %s69
      %p78 = scmp.eq.s32.totalorder %s16, 0
      %p79 = por %p77, %p78
      %p80 = scmp.ne.s32.totalorder %s68, %s69
      %p81 = scmp.eq.s32.totalorder %s17, 3
      %p82 = por %p80, %p81
      %p84 = scmp.ne.s32.totalorder %s69, %s83
      %p85 = scmp.eq.s32.totalorder %s17, 0
      %p86 = por %p84, %p85
      %s88 = sadd.s32 %s87, 1
      %p91 = scmp.eq.s32.totalorder %s11, 3
      %p92 = scmp.ne.s32.totalorder %s87, %s89
      %p93 = scmp.eq.s32.totalorder %s11, 0
      %p94 = por %p92, %p93
      %p95 = scmp.ne.s32.totalorder %s87, %s89
      %p96 = scmp.eq.s32.totalorder %s16, 3
      %p97 = por %p95, %p96
      %p98 = scmp.ne.s32.totalorder %s89, %s90
      %p99 = scmp.eq.s32.totalorder %s16, 0
      %p100 = por %p98, %p99
      %p101 = scmp.ne.s32.totalorder %s89, %s90
      %p102 = scmp.eq.s32.totalorder %s17, 3
      %p103 = por %p101, %p102
      %p105 = scmp.ne.s32.totalorder %s90, %s104
      %p106 = scmp.eq.s32.totalorder %s17, 0
      %p107 = por %p105, %p106
      %s109 = sadd.s32 %s108, 1
      %p112 = scmp.eq.s32.totalorder %s11, 3
      %p113 = scmp.ne.s32.totalorder %s108, %s110
      %p114 = scmp.eq.s32.totalorder %s11, 0
      %p115 = por %p113, %p114
      %p116 = scmp.ne.s32.totalorder %s108, %s110
      %p117 = scmp.eq.s32.totalorder %s16, 3
      %p118 = por %p116, %p117
      %p119 = scmp.ne.s32.totalorder %s110, %s111
      %p120 = scmp.eq.s32.totalorder %s16, 0
      %p121 = por %p119, %p120
      %p122 = scmp.ne.s32.totalorder %s110, %s111
      %p123 = scmp.eq.s32.totalorder %s17, 3
      %p124 = por %p122, %p123
      %p126 = scmp.ne.s32.totalorder %s111, %s125
      %p127 = scmp.eq.s32.totalorder %s17, 0
      %p128 = por %p126, %p127
      %s129 = ssub.s32 %s11, %s18
      %p130 = scmp.eq.s32.totalorder %s129, 0
      %s132 = sadd.s32 %s131, 1
      %s133 = scalar_select %p130, %s131, %s132
      %p136 = pneg %p130
      %p137 = scmp.eq.s32.totalorder %s11, 3
      %p138 = por %p136, %p137
      %p139 = scmp.ne.s32.totalorder %s131, %s134
      %p140 = scmp.eq.s32.totalorder %s11, 0
      %p141 = por %p139, %p140
      %p142 = scmp.ne.s32.totalorder %s131, %s134
      %p143 = scmp.eq.s32.totalorder %s16, 3
      %p144 = por %p142, %p143
      %p145 = scmp.ne.s32.totalorder %s134, %s135
      %p146 = scmp.eq.s32.totalorder %s16, 0
      %p147 = por %p145, %p146
      %p148 = scmp.ne.s32.totalorder %s134, %s135
      %p149 = scmp.eq.s32.totalorder %s17, 3
      %p150 = por %p148, %p149
      %p152 = scmp.ne.s32.totalorder %s135, %s151
      %p153 = scmp.eq.s32.totalorder %s17, 0
      %p154 = por %p152, %p153
      %p155 = scmp.le.s32.totalorder 1, %s11
      %p156 = scmp.lt.s32.totalorder %s11, 5
      %p157 = pnand %p155, %p156
      %p158 = pneg %p157
      // Predicated region
      $region9: #{tpu_custom_call.1} parent=5 // pred_check
        _
      $region10: #{tpu_custom_call.1} parent=5 // pred_check_branch
        %160 = sbr.rel (%p157) target = $region12
      $region11: #{tpu_custom_call.1} parent=5 // pred_region
        %s161 = ssub.s32 %s11, 1
        // Predicated region
        $region13: #{tpu_custom_call.1} parent=11 // pred_check
          %p162 = pneg %p58
        $region14: #{tpu_custom_call.1} parent=11 // pred_check_branch
          %164 = sbr.rel (%p162) target = $region16
        $region15: #{tpu_custom_call.1} parent=11 // pred_region
          _
        $region16: #{tpu_custom_call.1} parent=11 // pred_fallthru
          _
        // Predicated region
        $region17: #{tpu_custom_call.1} parent=11 // pred_check
          %p165 = pneg %p79
        $region18: #{tpu_custom_call.1} parent=11 // pred_check_branch
          %167 = sbr.rel (%p165) target = $region20
        $region19: #{tpu_custom_call.1} parent=11 // pred_region
          _
        $region20: #{tpu_custom_call.1} parent=11 // pred_fallthru
          _
        // Predicated region
        $region21: #{tpu_custom_call.1} parent=11 // pred_check
          %p168 = pneg %p100
        $region22: #{tpu_custom_call.1} parent=11 // pred_check_branch
          %170 = sbr.rel (%p168) target = $region24
        $region23: #{tpu_custom_call.1} parent=11 // pred_region
          _
        $region24: #{tpu_custom_call.1} parent=11 // pred_fallthru
          _
        // Predicated region
        $region25: #{tpu_custom_call.1} parent=11 // pred_check
          %p171 = pneg %p121
        $region26: #{tpu_custom_call.1} parent=11 // pred_check_branch
          %173 = sbr.rel (%p171) target = $region28
        $region27: #{tpu_custom_call.1} parent=11 // pred_region
          _
        $region28: #{tpu_custom_call.1} parent=11 // pred_fallthru
          _
      $region12: #{tpu_custom_call.1} parent=5 // pred_fallthru
        _
      %p174 = scmp.lt.s32.totalorder %s11, 4
      // Predicated region
      $region29: #{tpu_custom_call.1} parent=5 // pred_check
        %p175 = pneg %p174
      $region30: #{tpu_custom_call.1} parent=5 // pred_check_branch
        %177 = sbr.rel (%p175) target = $region32
      $region31: #{tpu_custom_call.1} parent=5 // pred_region
        // Predicated region
        $region33: #{tpu_custom_call.1} parent=31 // pred_check
          %p178 = pneg %p31
        $region34: #{tpu_custom_call.1} parent=31 // pred_check_branch
          %180 = sbr.rel (%p178) target = $region36
        $region35: #{tpu_custom_call.1} parent=31 // pred_region
          %s181 = smul.u32 8, %s11
          %s182 = ssub.s32 25, %s181
          %p183 = scmp.lt.s32.totalorder %s182, 8
          %s184 = scalar_select %p183, %s182, 8
          %s185 = smul.u32 128, %s184
          %p186 = scmp.lt.s32.totalorder %s181, 24
          %s187 = scalar_select %p186, %s181, 24
          %s188 = smul.addr %s187, 8
          %s189 = scalar_lea.vmem %s0, %s188
          %s190 = smul.u32 8, %s11
          %s191 = ssub.s32 25, %s190
          %p192 = scmp.lt.s32.totalorder %s191, 8
          %s193 = scalar_select %p192, %s191, 8
          %s194 = smul.u32 128, %s193
        $region36: #{tpu_custom_call.1} parent=31 // pred_fallthru
          _
      $region32: #{tpu_custom_call.1} parent=5 // pred_fallthru
        _
      %p195 = scmp.le.s32.totalorder 1, %s11
      %p196 = scmp.lt.s32.totalorder %s11, 5
      %p197 = pnand %p195, %p196
      %p198 = pneg %p197
      // Predicated region
      $region37: #{tpu_custom_call.1} parent=5 // pred_check
        _
      $region38: #{tpu_custom_call.1} parent=5 // pred_check_branch
        %200 = sbr.rel (%p197) target = $region40
      $region39: #{tpu_custom_call.1} parent=5 // pred_region
        %s201 = ssub.s32 %s11, 1
        %s202 = smul.u32 8, %s16
        %s203 = ssub.s32 25, %s202
        %p204 = scmp.lt.s32.totalorder %s203, 8
        %s205 = scalar_select %p204, %s203, 8
        %s206 = smul.u32 128, %s205
        %p207 = scmp.lt.s32.totalorder %s202, 24
        %s208 = scalar_select %p207, %s202, 24
        %s209 = smul.addr %s208, 8
        %s210 = scalar_lea.vmem %s0, %s209
        %p211 = pneg %p37
        %p212 = pneg %p34
        %p213 = pneg %p58
        %p214 = pneg %p55
        %p215 = pneg %p79
        %p216 = pneg %p76
        %p217 = pneg %p100
        %p218 = pneg %p97
        %p219 = pneg %p121
        %p220 = pneg %p118
        %p221 = pneg %p147
        %p222 = pneg %p144
        %s223 = sand.u32 %s134, 1
        %s224 = sand.u32 %s134, 1
        %s225 = smul.addr %s224, 64
        %s226 = scalar_lea.vmem [#allocation2], %s225
        %s227 = smul.u32 8, %s16
        %s228 = ssub.s32 25, %s227
        %p229 = scmp.lt.s32.totalorder %s228, 8
        %s230 = scalar_select %p229, %s228, 8
        %s231 = smul.u32 128, %s230
        %p232 = scmp.lt.s32.totalorder %s227, 24
        %s233 = scalar_select %p232, %s227, 24
        %s234 = smul.addr %s233, 8
        %s235 = scalar_lea.vmem %s0, %s234
        %s236 = smul.u32 8, %s16
        %s237 = ssub.s32 25, %s236
        %p238 = scmp.lt.s32.totalorder %s237, 8
        %s239 = scalar_select %p238, %s237, 8
        %s240 = smul.u32 128, %s239
        %s241 = smul.u32 8, %s16
        %s242 = ssub.s32 25, %s241
        %p243 = scmp.lt.s32.totalorder %s242, 8
        %s244 = scalar_select %p243, %s242, 8
        %s245 = smul.u32 128, %s244
        %v246 = vld [vmem:[%s235] sm:$0xff]
        %v247 = vld [vmem:[%s235 + $0x8] sm:$0xff]
        %v248 = vld [vmem:[%s235 + $0x10] sm:$0xff]
        %v249 = vld [vmem:[%s235 + $0x18] sm:$0xff]
        %v250 = vld [vmem:[%s235 + $0x20] sm:$0xff]
        %v251 = vld [vmem:[%s235 + $0x28] sm:$0xff]
        %v252 = vld [vmem:[%s235 + $0x30] sm:$0xff]
        %v253 = vld [vmem:[%s235 + $0x38] sm:$0xff]
        %v254 = vld [vmem:[%s1] sm:$0xff]
        %v255 = vld [vmem:[%s1 + $0x8] sm:$0xff]
        %v256 = vld [vmem:[%s1 + $0x10] sm:$0xff]
        %v257 = vld [vmem:[%s1 + $0x18] sm:$0xff]
        %v258 = vld [vmem:[%s2] sm:$0x1]
        %v260 = vlaneseq
        %v261 = vshrl.u32 %v260, 7
        %v262 = vsub.s32 0, %v261
        %v263 = vrot.slane %v258, %v262
        %vm265 = vcmask 261120
        %v267 = vsel %vm265, %v246, 0
        %v270 = vsel %vm265, %v247, 0
        %v273 = vsel %vm265, %v248, 0
        %v276 = vsel %vm265, %v249, 0
        %v279 = vsel %vm265, %v250, 0
        %v282 = vsel %vm265, %v251, 0
        %v285 = vsel %vm265, %v252, 0
        %v288 = vsel %vm265, %v253, 0
        %290 = vmatprep.subr.mxu0 0.0
        %291 = vmatpush1.msra.mxu0 0.0
        %292 = vmatprep.subr.mxu0 0.0
        %293 = vmatpush1.msra.mxu0 0.0
        %294 = vmatprep.subr.mxu0 0.0
        %295 = vmatpush1.msra.mxu0 0.0
        %296 = vmatprep.subr.mxu0 0.0
        %297 = vmatpush1.msra.mxu0 0.0
        %298 = vmatprep.subr.mxu0 0.0
        %299 = vmatpush1.msra.mxu0 0.0
        %300 = vmatprep.subr.mxu0 0.0
        %301 = vmatpush1.msra.mxu0 0.0
        %302 = vmatprep.subr.mxu0 0.0
        %303 = vmatpush1.msra.mxu0 0.0
        %304 = vmatprep.subr.mxu0 0.0
        %305 = vmatpush1.msra.mxu0 0.0
        %306 = vmatprep.subr.mxu0 0.0
        %307 = vmatpush1.msra.mxu0 0.0
        %308 = vmatprep.subr.mxu0 0.0
        %309 = vmatpush1.msra.mxu0 0.0
        %310 = vmatprep.subr.mxu0 0.0
        %311 = vmatpush1.msra.mxu0 0.0
        %312 = vmatprep.subr.mxu0 0.0
        %313 = vmatpush1.msra.mxu0 0.0
        %314 = vmatprep.subr.mxu0 0.0
        %315 = vmatpush1.msra.mxu0 %v257
        %316 = vmatprep.subr.mxu0 0.0
        %317 = vmatpush1.msra.mxu0 %v256
        %318 = vmatprep.subr.mxu0 0.0
        %319 = vmatpush1.msra.mxu0 %v255
        %320 = vmatprep.subr.mxu0 0.0
        %321 = vmatpush1.msra.mxu0 %v254
        %322 = vmatprep.subr.mxu0 0.0
        %323 = vmatpush2.msra.mxu0 0.0
        %324 = vmatprep.subr.mxu0 0.0
        %325 = vmatpush2.msra.mxu0 0.0
        %326 = vmatprep.subr.mxu0 0.0
        %327 = vmatpush2.msra.mxu0 0.0
        %328 = vmatprep.subr.mxu0 0.0
        %329 = vmatpush2.msra.mxu0 0.0
        %330 = vmatprep.subr.mxu0 0.0
        %331 = vmatpush2.msra.mxu0 0.0
        %332 = vmatprep.subr.mxu0 0.0
        %333 = vmatpush2.msra.mxu0 0.0
        %334 = vmatprep.subr.mxu0 0.0
        %335 = vmatpush2.msra.mxu0 0.0
        %336 = vmatprep.subr.mxu0 0.0
        %337 = vmatpush2.msra.mxu0 0.0
        %338 = vmatprep.subr.mxu0 0.0
        %339 = vmatpush2.msra.mxu0 0.0
        %340 = vmatprep.subr.mxu0 0.0
        %341 = vmatpush2.msra.mxu0 0.0
        %342 = vmatprep.subr.mxu0 0.0
        %343 = vmatpush2.msra.mxu0 0.0
        %344 = vmatprep.subr.mxu0 0.0
        %345 = vmatpush2.msra.mxu0 0.0
        %346 = vmatprep.subr.mxu0 0.0
        %347 = vmatpush2.msra.mxu0 0.0
        %348 = vmatprep.subr.mxu0 0.0
        %349 = vmatpush2.msra.mxu0 0.0
        %350 = vmatprep.subr.mxu0 0.0
        %351 = vmatpush2.msra.mxu0 0.0
        %352 = vmatprep.subr.mxu0 0.0
        %353 = vmatpush2.msra.mxu0 0.0
        %354 = vmatprep.mubr.f32.mxu0 0.0
        %355 = vmatmul.mubr.f32.gmra.mxu0 %v267
        %v356 = vpop.f32.mrf.mxu0
        %v357 = vadd.f32 %v263, %v356
        %v358 = vpop.f32.mrf.mxu0
        %359 = vmatprep.mubr.f32.mxu0 0.0
        %360 = vmatmul.mubr.f32.gmra.mxu0 %v270
        %v361 = vpop.f32.mrf.mxu0
        %v362 = vadd.f32 %v263, %v361
        %v363 = vpop.f32.mrf.mxu0
        %364 = vmatprep.mubr.f32.mxu0 0.0
        %365 = vmatmul.mubr.f32.gmra.mxu0 %v273
        %v366 = vpop.f32.mrf.mxu0
        %v367 = vadd.f32 %v263, %v366
        %v368 = vpop.f32.mrf.mxu0
        %369 = vmatprep.mubr.f32.mxu0 0.0
        %370 = vmatmul.mubr.f32.gmra.mxu0 %v276
        %v371 = vpop.f32.mrf.mxu0
        %v372 = vadd.f32 %v263, %v371
        %v373 = vpop.f32.mrf.mxu0
        %374 = vmatprep.mubr.f32.mxu0 0.0
        %375 = vmatmul.mubr.f32.gmra.mxu0 %v279
        %v376 = vpop.f32.mrf.mxu0
        %v377 = vadd.f32 %v263, %v376
        %v378 = vpop.f32.mrf.mxu0
        %379 = vmatprep.mubr.f32.mxu0 0.0
        %380 = vmatmul.mubr.f32.gmra.mxu0 %v282
        %v381 = vpop.f32.mrf.mxu0
        %v382 = vadd.f32 %v263, %v381
        %v383 = vpop.f32.mrf.mxu0
        %384 = vmatprep.mubr.f32.mxu0 0.0
        %385 = vmatmul.mubr.f32.gmra.mxu0 %v285
        %v386 = vpop.f32.mrf.mxu0
        %v387 = vadd.f32 %v263, %v386
        %v388 = vpop.f32.mrf.mxu0
        %389 = vmatprep.mubr.f32.mxu0 0.0
        %390 = vmatmul.mubr.f32.gmra.mxu0 %v288
        %v391 = vpop.f32.mrf.mxu0
        %v392 = vadd.f32 %v263, %v391
        %v393 = vpop.f32.mrf.mxu0
        %394 = vdwg.mxu0
        %v395 = vmax.f32 %v357, 0.0
        %v396 = vmax.f32 %v362, 0.0
        %v397 = vmax.f32 %v367, 0.0
        %v398 = vmax.f32 %v372, 0.0
        %v399 = vmax.f32 %v377, 0.0
        %v400 = vmax.f32 %v382, 0.0
        %v401 = vmax.f32 %v387, 0.0
        %v402 = vmax.f32 %v392, 0.0
        %v403 = vld [vmem:[%s3] sm:$0xff]
        %v404 = vld [vmem:[%s3 + $0x8] sm:$0xff]
        %v405 = vld [vmem:[%s3 + $0x10] sm:$0xff]
        %v406 = vld [vmem:[%s3 + $0x18] sm:$0xff]
        %v407 = vld [vmem:[%s3 + $0x20] sm:$0xff]
        %v408 = vld [vmem:[%s3 + $0x28] sm:$0xff]
        %v409 = vld [vmem:[%s3 + $0x30] sm:$0xff]
        %v410 = vld [vmem:[%s3 + $0x38] sm:$0xff]
        %v411 = vld [vmem:[%s4] sm:$0x1]
        %v413 = vlaneseq
        %v414 = vshrl.u32 %v413, 7
        %v415 = vsub.s32 0, %v414
        %v416 = vrot.slane %v411, %v415
        %vm418 = vcmask 523264
        %v420 = vsel %vm418, %v395, 0
        %v423 = vsel %vm418, %v396, 0
        %v426 = vsel %vm418, %v397, 0
        %v429 = vsel %vm418, %v398, 0
        %v432 = vsel %vm418, %v399, 0
        %v435 = vsel %vm418, %v400, 0
        %v438 = vsel %vm418, %v401, 0
        %v441 = vsel %vm418, %v402, 0
        %443 = vmatprep.subr.mxu0 0.0
        %444 = vmatpush1.msra.mxu0 0.0
        %445 = vmatprep.subr.mxu0 0.0
        %446 = vmatpush1.msra.mxu0 0.0
        %447 = vmatprep.subr.mxu0 0.0
        %448 = vmatpush1.msra.mxu0 0.0
        %449 = vmatprep.subr.mxu0 0.0
        %450 = vmatpush1.msra.mxu0 0.0
        %451 = vmatprep.subr.mxu0 0.0
        %452 = vmatpush1.msra.mxu0 0.0
        %453 = vmatprep.subr.mxu0 0.0
        %454 = vmatpush1.msra.mxu0 0.0
        %455 = vmatprep.subr.mxu0 0.0
        %456 = vmatpush1.msra.mxu0 0.0
        %457 = vmatprep.subr.mxu0 0.0
        %458 = vmatpush1.msra.mxu0 0.0
        %459 = vmatprep.subr.mxu0 0.0
        %460 = vmatpush1.msra.mxu0 %v410
        %461 = vmatprep.subr.mxu0 0.0
        %462 = vmatpush1.msra.mxu0 %v409
        %463 = vmatprep.subr.mxu0 0.0
        %464 = vmatpush1.msra.mxu0 %v408
        %465 = vmatprep.subr.mxu0 0.0
        %466 = vmatpush1.msra.mxu0 %v407
        %467 = vmatprep.subr.mxu0 0.0
        %468 = vmatpush1.msra.mxu0 %v406
        %469 = vmatprep.subr.mxu0 0.0
        %470 = vmatpush1.msra.mxu0 %v405
        %471 = vmatprep.subr.mxu0 0.0
        %472 = vmatpush1.msra.mxu0 %v404
        %473 = vmatprep.subr.mxu0 0.0
        %474 = vmatpush1.msra.mxu0 %v403
        %475 = vmatprep.subr.mxu0 0.0
        %476 = vmatpush2.msra.mxu0 0.0
        %477 = vmatprep.subr.mxu0 0.0
        %478 = vmatpush2.msra.mxu0 0.0
        %479 = vmatprep.subr.mxu0 0.0
        %480 = vmatpush2.msra.mxu0 0.0
        %481 = vmatprep.subr.mxu0 0.0
        %482 = vmatpush2.msra.mxu0 0.0
        %483 = vmatprep.subr.mxu0 0.0
        %484 = vmatpush2.msra.mxu0 0.0
        %485 = vmatprep.subr.mxu0 0.0
        %486 = vmatpush2.msra.mxu0 0.0
        %487 = vmatprep.subr.mxu0 0.0
        %488 = vmatpush2.msra.mxu0 0.0
        %489 = vmatprep.subr.mxu0 0.0
        %490 = vmatpush2.msra.mxu0 0.0
        %491 = vmatprep.subr.mxu0 0.0
        %492 = vmatpush2.msra.mxu0 0.0
        %493 = vmatprep.subr.mxu0 0.0
        %494 = vmatpush2.msra.mxu0 0.0
        %495 = vmatprep.subr.mxu0 0.0
        %496 = vmatpush2.msra.mxu0 0.0
        %497 = vmatprep.subr.mxu0 0.0
        %498 = vmatpush2.msra.mxu0 0.0
        %499 = vmatprep.subr.mxu0 0.0
        %500 = vmatpush2.msra.mxu0 0.0
        %501 = vmatprep.subr.mxu0 0.0
        %502 = vmatpush2.msra.mxu0 0.0
        %503 = vmatprep.subr.mxu0 0.0
        %504 = vmatpush2.msra.mxu0 0.0
        %505 = vmatprep.subr.mxu0 0.0
        %506 = vmatpush2.msra.mxu0 0.0
        %507 = vmatprep.mubr.f32.mxu0 0.0
        %508 = vmatmul.mubr.f32.gmra.mxu0 %v420
        %v509 = vpop.f32.mrf.mxu0
        %v510 = vadd.f32 %v416, %v509
        %v511 = vpop.f32.mrf.mxu0
        %512 = vmatprep.mubr.f32.mxu0 0.0
        %513 = vmatmul.mubr.f32.gmra.mxu0 %v423
        %v514 = vpop.f32.mrf.mxu0
        %v515 = vadd.f32 %v416, %v514
        %v516 = vpop.f32.mrf.mxu0
        %517 = vmatprep.mubr.f32.mxu0 0.0
        %518 = vmatmul.mubr.f32.gmra.mxu0 %v426
        %v519 = vpop.f32.mrf.mxu0
        %v520 = vadd.f32 %v416, %v519
        %v521 = vpop.f32.mrf.mxu0
        %522 = vmatprep.mubr.f32.mxu0 0.0
        %523 = vmatmul.mubr.f32.gmra.mxu0 %v429
        %v524 = vpop.f32.mrf.mxu0
        %v525 = vadd.f32 %v416, %v524
        %v526 = vpop.f32.mrf.mxu0
        %527 = vmatprep.mubr.f32.mxu0 0.0
        %528 = vmatmul.mubr.f32.gmra.mxu0 %v432
        %v529 = vpop.f32.mrf.mxu0
        %v530 = vadd.f32 %v416, %v529
        %v531 = vpop.f32.mrf.mxu0
        %532 = vmatprep.mubr.f32.mxu0 0.0
        %533 = vmatmul.mubr.f32.gmra.mxu0 %v435
        %v534 = vpop.f32.mrf.mxu0
        %v535 = vadd.f32 %v416, %v534
        %v536 = vpop.f32.mrf.mxu0
        %537 = vmatprep.mubr.f32.mxu0 0.0
        %538 = vmatmul.mubr.f32.gmra.mxu0 %v438
        %v539 = vpop.f32.mrf.mxu0
        %v540 = vadd.f32 %v416, %v539
        %v541 = vpop.f32.mrf.mxu0
        %542 = vmatprep.mubr.f32.mxu0 0.0
        %543 = vmatmul.mubr.f32.gmra.mxu0 %v441
        %v544 = vpop.f32.mrf.mxu0
        %v545 = vadd.f32 %v416, %v544
        %v546 = vpop.f32.mrf.mxu0
        %547 = vdwg.mxu0
        %vm548 = vcmask 64512
        %549 = vst.msk [vmem:[%s226] sm:$0xff] %vm548, %v510
        %550 = vst.msk [vmem:[%s226 + $0x8] sm:$0xff] %vm548, %v515
        %551 = vst.msk [vmem:[%s226 + $0x10] sm:$0xff] %vm548, %v520
        %552 = vst.msk [vmem:[%s226 + $0x18] sm:$0xff] %vm548, %v525
        %553 = vst.msk [vmem:[%s226 + $0x20] sm:$0xff] %vm548, %v530
        %554 = vst.msk [vmem:[%s226 + $0x28] sm:$0xff] %vm548, %v535
        %555 = vst.msk [vmem:[%s226 + $0x30] sm:$0xff] %vm548, %v540
        %556 = vst.msk [vmem:[%s226 + $0x38] sm:$0xff] %vm548, %v545
        %s557 = sand.u32 %s134, 1
        %s558 = sand.u32 %s134, 1
        %s559 = smul.addr %s558, 64
        %s560 = scalar_lea.vmem [#allocation2], %s559
        // Predicated region
        $region41: #{tpu_custom_call.1} parent=39 // pred_check
          %p561 = pneg %p144
        $region42: #{tpu_custom_call.1} parent=39 // pred_check_branch
          %563 = sbr.rel (%p561) target = $region44
        $region43: #{tpu_custom_call.1} parent=39 // pred_region
          %s564 = smul.u32 8, %s16
          %s565 = ssub.s32 25, %s564
          %p566 = scmp.lt.s32.totalorder %s565, 8
          %s567 = scalar_select %p566, %s565, 8
          %s568 = smul.u32 128, %s567
          %p569 = scmp.ne.s32.totalorder 0, %s568
          %s570 = smul.addr %s564, 8
          %s571 = scalar_lea.vmem %s5, %s570
          // Predicated region
          $region45: #{tpu_custom_call.1} parent=43 // pred_check
            %p572 = pneg %p569
          $region46: #{tpu_custom_call.1} parent=43 // pred_check_branch
            %574 = sbr.rel (%p572) target = $region48
          $region47: #{tpu_custom_call.1} parent=43 // pred_region
            // Predicated region
            $region49: #{tpu_custom_call.1} parent=47 // pred_check
              _
            $region50: #{tpu_custom_call.1} parent=47 // pred_check_branch
              %576 = sbr.rel (0) target = $region52
            $region51: #{tpu_custom_call.1} parent=47 // pred_region
              // Predicated region
              $region71: #{tpu_custom_call.1} parent=51 // pred_check
                _
              $region72: #{tpu_custom_call.1} parent=51 // pred_check_branch
                %640 = sbr.rel (0) target = $region74
              $region73: #{tpu_custom_call.1} parent=51 // pred_region
                %s641 = sshrl.u32 %s567, 3
                // While loop
                $region75: #{tpu_custom_call.1} parent=73 // loop_pre_header
                  _
                $region76: #{tpu_custom_call.1} parent=73 // loop_header
                  %s643 = sphi 0, %s645
                  %p644 = scmp.ge.s32.totalorder %s643, %s641
                  %s648 = sphi 0, %s669
                  %s649 = sphi %s560, %s672
                  %s650 = sphi %s571, %s673
                $region77: #{tpu_custom_call.1} parent=73 // loop_header_branch
                  %647 = sbr.rel (%p644) target = $region81
                $region78: #{tpu_custom_call.1} parent=73 // loop_body
                  %v651 = vld [vmem:[%s649] sm:$0xff]
                  %652 = vst [vmem:[%s650] sm:$0xff] %v651
                  %v653 = vld [vmem:[%s649 + $0x8] sm:$0xff]
                  %654 = vst [vmem:[%s650 + $0x8] sm:$0xff] %v653
                  %v655 = vld [vmem:[%s649 + $0x10] sm:$0xff]
                  %656 = vst [vmem:[%s650 + $0x10] sm:$0xff] %v655
                  %v657 = vld [vmem:[%s649 + $0x18] sm:$0xff]
                  %658 = vst [vmem:[%s650 + $0x18] sm:$0xff] %v657
                  %v659 = vld [vmem:[%s649 + $0x20] sm:$0xff]
                  %660 = vst [vmem:[%s650 + $0x20] sm:$0xff] %v659
                  %v661 = vld [vmem:[%s649 + $0x28] sm:$0xff]
                  %662 = vst [vmem:[%s650 + $0x28] sm:$0xff] %v661
                  %v663 = vld [vmem:[%s649 + $0x30] sm:$0xff]
                  %664 = vst [vmem:[%s650 + $0x30] sm:$0xff] %v663
                  %v665 = vld [vmem:[%s649 + $0x38] sm:$0xff]
                  %666 = vst [vmem:[%s650 + $0x38] sm:$0xff] %v665
                  %s667 = sadd.s32 1, %s648
                  %p668 = scmp.ge.s32.totalorder %s667, %s641
                  %s669 = scalar_select %p668, 0, %s667
                  %s670 = smul.u32 %s669, 64
                  %s671 = smul.u32 %s669, 64
                  %s672 = scalar_lea.vmem %s560, %s670 [#allocation2]
                  %s673 = scalar_lea.vmem %s571, %s671
                $region79: #{tpu_custom_call.1} parent=73 // loop_footer
                  %s645 = sadd.s32 %s643, 1
                $region80: #{tpu_custom_call.1} parent=73 // loop_footer_branch
                  %642 = sbr.rel target = $region76
                $region81: #{tpu_custom_call.1} parent=73 // loop_exit
                  _
                %s674 = sshrl.u32 %s567, 3
                %s675 = sand.u32 %s567, 7
                %s676 = smul.u32 %s674, 8
                %s677 = smul.u32 8, %s676
                %s678 = scalar_lea.vmem %s560, %s677 [#allocation2]
                %s679 = smul.u32 8, %s676
                %s680 = scalar_lea.vmem %s571, %s679
                // While loop
                $region82: #{tpu_custom_call.1} parent=73 // loop_pre_header
                  _
                $region83: #{tpu_custom_call.1} parent=73 // loop_header
                  %s682 = sphi 0, %s684
                  %p683 = scmp.ge.s32.totalorder %s682, %s675
                  %s687 = sphi 0, %s694
                  %s688 = sphi %s678, %s697
                  %s689 = sphi %s680, %s698
                $region84: #{tpu_custom_call.1} parent=73 // loop_header_branch
                  %686 = sbr.rel (%p683) target = $region88
                $region85: #{tpu_custom_call.1} parent=73 // loop_body
                  %v690 = vld [vmem:[%s688] sm:$0xff]
                  %691 = vst [vmem:[%s689] sm:$0xff] %v690
                  %s692 = sadd.s32 1, %s687
                  %p693 = scmp.ge.s32.totalorder %s692, %s675
                  %s694 = scalar_select %p693, 0, %s692
                  %s695 = smul.u32 %s694, 8
                  %s696 = smul.u32 %s694, 8
                  %s697 = scalar_lea.vmem %s678, %s695 [#allocation2]
                  %s698 = scalar_lea.vmem %s680, %s696
                $region86: #{tpu_custom_call.1} parent=73 // loop_footer
                  %s684 = sadd.s32 %s682, 1
                $region87: #{tpu_custom_call.1} parent=73 // loop_footer_branch
                  %681 = sbr.rel target = $region83
                $region88: #{tpu_custom_call.1} parent=73 // loop_exit
                  _
              $region74: #{tpu_custom_call.1} parent=51 // pred_fallthru
                _
              // Predicated region
              $region89: #{tpu_custom_call.1} parent=51 // pred_check
                _
              $region90: #{tpu_custom_call.1} parent=51 // pred_check_branch
                %700 = sbr.rel target = $region92
              $region91: #{tpu_custom_call.1} parent=51 // pred_region
                _
              $region92: #{tpu_custom_call.1} parent=51 // pred_fallthru
                _
            $region52: #{tpu_custom_call.1} parent=47 // pred_fallthru
              _
            // Predicated region
            $region53: #{tpu_custom_call.1} parent=47 // pred_check
              _
            $region54: #{tpu_custom_call.1} parent=47 // pred_check_branch
              %578 = sbr.rel target = $region56
            $region55: #{tpu_custom_call.1} parent=47 // pred_region
              %s580 = ssub.s32 256, 1
              %s581 = sshrl.u32 %s567, 3
              // While loop
              $region57: #{tpu_custom_call.1} parent=55 // loop_pre_header
                _
              $region58: #{tpu_custom_call.1} parent=55 // loop_header
                %s583 = sphi 0, %s585
                %p584 = scmp.ge.s32.totalorder %s583, %s581
                %s588 = sphi 0, %s609
                %s589 = sphi %s560, %s612
                %s590 = sphi %s571, %s613
              $region59: #{tpu_custom_call.1} parent=55 // loop_header_branch
                %587 = sbr.rel (%p584) target = $region63
              $region60: #{tpu_custom_call.1} parent=55 // loop_body
                %v591 = vld [vmem:[%s589] sm:%s580]
                %592 = vst [vmem:[%s590] sm:%s580] %v591
                %v593 = vld [vmem:[%s589 + $0x8] sm:%s580]
                %594 = vst [vmem:[%s590 + $0x8] sm:%s580] %v593
                %v595 = vld [vmem:[%s589 + $0x10] sm:%s580]
                %596 = vst [vmem:[%s590 + $0x10] sm:%s580] %v595
                %v597 = vld [vmem:[%s589 + $0x18] sm:%s580]
                %598 = vst [vmem:[%s590 + $0x18] sm:%s580] %v597
                %v599 = vld [vmem:[%s589 + $0x20] sm:%s580]
                %600 = vst [vmem:[%s590 + $0x20] sm:%s580] %v599
                %v601 = vld [vmem:[%s589 + $0x28] sm:%s580]
                %602 = vst [vmem:[%s590 + $0x28] sm:%s580] %v601
                %v603 = vld [vmem:[%s589 + $0x30] sm:%s580]
                %604 = vst [vmem:[%s590 + $0x30] sm:%s580] %v603
                %v605 = vld [vmem:[%s589 + $0x38] sm:%s580]
                %606 = vst [vmem:[%s590 + $0x38] sm:%s580] %v605
                %s607 = sadd.s32 1, %s588
                %p608 = scmp.ge.s32.totalorder %s607, %s581
                %s609 = scalar_select %p608, 0, %s607
                %s610 = smul.u32 %s609, 64
                %s611 = smul.u32 %s609, 64
                %s612 = scalar_lea.vmem %s560, %s610 [#allocation2]
                %s613 = scalar_lea.vmem %s571, %s611
              $region61: #{tpu_custom_call.1} parent=55 // loop_footer
                %s585 = sadd.s32 %s583, 1
              $region62: #{tpu_custom_call.1} parent=55 // loop_footer_branch
                %582 = sbr.rel target = $region58
              $region63: #{tpu_custom_call.1} parent=55 // loop_exit
                _
              %s614 = sshrl.u32 %s567, 3
              %s615 = sand.u32 %s567, 7
              %s616 = smul.u32 %s614, 8
              %s617 = smul.u32 8, %s616
              %s618 = scalar_lea.vmem %s560, %s617 [#allocation2]
              %s619 = smul.u32 8, %s616
              %s620 = scalar_lea.vmem %s571, %s619
              // While loop
              $region64: #{tpu_custom_call.1} parent=55 // loop_pre_header
                _
              $region65: #{tpu_custom_call.1} parent=55 // loop_header
                %s622 = sphi 0, %s624
                %p623 = scmp.ge.s32.totalorder %s622, %s615
                %s627 = sphi 0, %s634
                %s628 = sphi %s618, %s637
                %s629 = sphi %s620, %s638
              $region66: #{tpu_custom_call.1} parent=55 // loop_header_branch
                %626 = sbr.rel (%p623) target = $region70
              $region67: #{tpu_custom_call.1} parent=55 // loop_body
                %v630 = vld [vmem:[%s628] sm:%s580]
                %631 = vst [vmem:[%s629] sm:%s580] %v630
                %s632 = sadd.s32 1, %s627
                %p633 = scmp.ge.s32.totalorder %s632, %s615
                %s634 = scalar_select %p633, 0, %s632
                %s635 = smul.u32 %s634, 8
                %s636 = smul.u32 %s634, 8
                %s637 = scalar_lea.vmem %s618, %s635 [#allocation2]
                %s638 = scalar_lea.vmem %s620, %s636
              $region68: #{tpu_custom_call.1} parent=55 // loop_footer
                %s624 = sadd.s32 %s622, 1
              $region69: #{tpu_custom_call.1} parent=55 // loop_footer_branch
                %621 = sbr.rel target = $region65
              $region70: #{tpu_custom_call.1} parent=55 // loop_exit
                _
            $region56: #{tpu_custom_call.1} parent=47 // pred_fallthru
              _
          $region48: #{tpu_custom_call.1} parent=43 // pred_fallthru
            _
          %701 = vnop
        $region44: #{tpu_custom_call.1} parent=39 // pred_fallthru
          _
      $region40: #{tpu_custom_call.1} parent=5 // pred_fallthru
        _
      %p702 = scmp.le.s32.totalorder 2, %s11
      // Predicated region
      $region93: #{tpu_custom_call.1} parent=5 // pred_check
        %p703 = pneg %p702
      $region94: #{tpu_custom_call.1} parent=5 // pred_check_branch
        %705 = sbr.rel (%p703) target = $region96
      $region95: #{tpu_custom_call.1} parent=5 // pred_region
        %s706 = ssub.s32 %s11, 2
        // Predicated region
        $region97: #{tpu_custom_call.1} parent=95 // pred_check
          %p707 = pneg %p150
        $region98: #{tpu_custom_call.1} parent=95 // pred_check_branch
          %709 = sbr.rel (%p707) target = $region100
        $region99: #{tpu_custom_call.1} parent=95 // pred_region
          %s710 = sand.u32 %s135, 1
          %s711 = sand.u32 %s135, 1
          %s712 = smul.addr %s711, 64
          %s713 = scalar_lea.vmem [#allocation2], %s712
        $region100: #{tpu_custom_call.1} parent=95 // pred_fallthru
          _
      $region96: #{tpu_custom_call.1} parent=5 // pred_fallthru
        _
    $region6: #{tpu_custom_call.1} parent=1 // loop_footer
      %s15 = sadd.s32 1, %s11
    $region7: #{tpu_custom_call.1} parent=1 // loop_footer_branch
      %10 = sbr.rel target = $region3
    $region8: #{tpu_custom_call.1} parent=1 // loop_exit
      _

</llo_original>
